<compile_context>
chip_gen: v6e
topology: v6e:2x2x1
jax: 0.10.0
libtpu: 0.0.40
codegen_flags: <defaults>
</compile_context>

<pallas_src>
import functools

import jax
import jax.numpy as jnp
from jax.experimental import pallas as pl
from jax.experimental.pallas import tpu as pltpu


# ----------------------------------------------------------------------------
# Kernel
# ----------------------------------------------------------------------------
def _leaky_screlu_kernel(x_ref, o_ref, *, l):
    # x_ref / o_ref: (block_rows, lanes) VMEM tiles. Compute in f32 in-vreg,
    # keep native dtype in HBM (cast on load/store only).
    x = x_ref[...].astype(jnp.float32)
    x_low = x * l
    x_high = l * (x - 1.0) + 1.0          # literal PyTorch formula
    y = x * x
    y = jnp.where(x < 0.0, x_low, y)
    y = jnp.where(x > 1.0, x_high, y)
    o_ref[...] = y.astype(o_ref.dtype)


# Pure-jnp path: ragged tails and tiny inputs (where fusion beats a custom call).
def _leaky_screlu_jnp(x, l):
    xf = x.astype(jnp.float32)
    x_low = xf * l
    x_high = l * (xf - 1.0) + 1.0
    y = xf * xf
    y = jnp.where(xf < 0.0, x_low, y)
    y = jnp.where(xf > 1.0, x_high, y)
    return y.astype(x.dtype)


# ----------------------------------------------------------------------------
# Layout selection
# ----------------------------------------------------------------------------
def _choose_layout(n, sublanes):
    """Pick (lanes, rows, tail) with lanes a multiple of 128.

    Prefers the widest lane width that both divides n exactly AND leaves
    rows >= the dtype's sublane packing (fully packed vregs, unmasked stores).
    Ragged sizes get a lane-aligned main slab plus a (< lanes)-element tail
    that is handled outside the kernel (no pad/slice copies over HBM).
    """
    candidates = (4096, 2048, 1024, 512, 256, 128)
    # 1) exact divisor with well-packed sublanes
    for w in candidates:
        if n % w == 0 and (n // w) >= sublanes:
            return w, n // w, 0
    # 2) exact divisor (tiny inputs: rows < sublanes, still correct)
    for w in candidates:
        if n % w == 0:
            return w, n // w, 0
    # 3) ragged: widest width keeping rows >= sublanes; tail finished in jnp
    for w in candidates:
        if (n // w) >= sublanes:
            rows = n // w
            return w, rows, n - rows * w
    rows = n // 128
    return 128, rows, n - rows * 128


# ----------------------------------------------------------------------------
# Wrapper
# ----------------------------------------------------------------------------
def leaky_screlu(x, l=0.01, *, target_block_bytes=4 * 1024 * 1024,
                 min_pallas_bytes=256 * 1024):
    """Elementwise LeakySCReLU on any-shaped float array (shape/dtype kept)."""
    orig_shape = x.shape
    dtype = x.dtype
    n = x.size
    itemsize = jnp.dtype(dtype).itemsize

    if n == 0:
        return x

    # Tiny inputs: let XLA fuse instead of paying a custom-call HBM round trip.
    if n * itemsize < min_pallas_bytes:
        return _leaky_screlu_jnp(x, l)

    sublanes = max(8, 32 // itemsize)          # 8 f32 / 16 bf16 / 32 int8
    lanes, rows, tail = _choose_layout(n, sublanes)
    if rows == 0:                              # n < 128: not worth a kernel
        return _leaky_screlu_jnp(x, l)

    x_flat = jnp.ravel(x)
    n_main = rows * lanes
    x_main = x_flat[:n_main].reshape(rows, lanes)

    # ~4 MiB blocks; in+out double-buffered = 4x block, covered by the explicit
    # 32 MiB vmem_limit below on every generation. Rows rounded to sublane pack.
    tile_rows = (target_block_bytes // (lanes * itemsize)) // sublanes * sublanes
    tile_rows = max(sublanes, tile_rows)

    if rows <= tile_rows:
        # Single block == full array dims (satisfies (8,128)-or-full rule):
        # one DMA in, one DMA out.
        block = (rows, lanes)
        grid = (1,)
    else:
        block = (tile_rows, lanes)
        grid = (pl.cdiv(rows, tile_rows),)     # partial last block masked

    kernel = functools.partial(_leaky_screlu_kernel, l=float(l))

    cost = pl.CostEstimate(
        flops=6 * n_main,                      # 2 mul + sub/add + 2 cmp/select-ish
        transcendentals=0,
        bytes_accessed=2 * n_main * itemsize,  # pure HBM stream: read + write
    )

    out_main = pl.pallas_call(
        kernel,
        out_shape=jax.ShapeDtypeStruct((rows, lanes), dtype),
        grid_spec=pltpu.PrefetchScalarGridSpec(
            num_scalar_prefetch=0,
            grid=grid,
            in_specs=[pl.BlockSpec(block, lambda i: (i, 0))],
            out_specs=pl.BlockSpec(block, lambda i: (i, 0)),
        ),
        compiler_params=pltpu.CompilerParams(
            dimension_semantics=("parallel",),
            vmem_limit_bytes=32 * 1024 * 1024,
        ),
        cost_estimate=cost,
    )(x_main)

    out_flat = out_main.reshape(-1)
    if tail:
        # < `lanes` elements; plain jnp, no extra full-array pad/slice passes.
        out_flat = jnp.concatenate(
            [out_flat, _leaky_screlu_jnp(x_flat[n_main:], l)])
    return out_flat.reshape(orig_shape)


# ----------------------------------------------------------------------------
# Reference (mirrors the PyTorch module)
# ----------------------------------------------------------------------------
def leaky_screlu_ref(x, l=0.01):
    return _leaky_screlu_jnp(x, l)


if __name__ == "__main__":
    key = jax.random.PRNGKey(0)
    k0, k1, k2 = jax.random.split(key, 3)

    # 1) NCHW activations at the module-consistent small shape; values span all
    #    three branches (<0, [0,1], >1). Force the Pallas path (tiny input).
    x = jax.random.normal(k0, (2, 4, 16, 16), dtype=jnp.float32) * 1.5
    y = jax.block_until_ready(leaky_screlu(x, l=0.01, min_pallas_bytes=0))
    y_ref = leaky_screlu_ref(x, l=0.01)
    assert y.shape == x.shape and y.dtype == x.dtype
    assert jnp.allclose(y, y_ref, atol=1e-5, rtol=1e-5)

    # 2) Ragged size: exercises the lane-aligned main slab + jnp tail path.
    xr = jax.random.normal(k1, (3, 1027), dtype=jnp.float32) * 2.0
    yr = jax.block_until_ready(leaky_screlu(xr, l=0.01, min_pallas_bytes=0))
    assert jnp.allclose(yr, leaky_screlu_ref(xr, l=0.01), atol=1e-5, rtol=1e-5)

    # 3) bf16 input at the same small shape: native dtype in HBM, f32 in-vreg.
    xb = (jax.random.normal(k2, (2, 4, 16, 16), dtype=jnp.float32) * 1.5
          ).astype(jnp.bfloat16)
    yb = jax.block_until_ready(leaky_screlu(xb, l=0.01, min_pallas_bytes=0))
    assert yb.dtype == jnp.bfloat16
    assert jnp.allclose(yb.astype(jnp.float32),
                        leaky_screlu_ref(xb, l=0.01).astype(jnp.float32),
                        atol=1e-2, rtol=1e-2)

    # 4) Multi-block grid (2 x 4 MiB blocks) to exercise the pipelined path and
    #    the explicit vmem_limit_bytes / "parallel" grid-axis sharding.
    xl = jax.random.normal(key, (1024, 2048), dtype=jnp.float32) * 1.5
    yl = jax.block_until_ready(leaky_screlu(xl, l=0.01))
    assert jnp.allclose(yl, leaky_screlu_ref(xl, l=0.01), atol=1e-5, rtol=1e-5)

    print("KERNEL_OK")
</pallas_src>

<mosaic_0001>
module attributes {stable_mosaic.version = 11 : i64} {
  func.func @_leaky_screlu_kernel(%arg0: i32, %arg1: memref<8x256xf32, #tpu.memory_space<vmem>>, %arg2: memref<8x256xf32, #tpu.memory_space<vmem>>) attributes {dimension_semantics = [#tpu.dimension_semantics<parallel>], iteration_bounds = array<i64: 1>, scalar_prefetch = 0 : i64, scratch_operands = 0 : i64, tpu.core_type = #tpu.core_type<tc>, window_params = [{transform_indices = @transform_0, window_bounds = array<i64: 8, 256>}, {transform_indices = @transform_1, window_bounds = array<i64: 8, 256>}]} {
    %c0 = arith.constant 0 : index
    %c0_0 = arith.constant 0 : index
    %0 = vector.load %arg1[%c0, %c0_0] : memref<8x256xf32, #tpu.memory_space<vmem>>, vector<8x256xf32>
    %cst = arith.constant 0.00999999977 : f32
    %1 = vector.broadcast %cst : f32 to vector<8x256xf32>
    %2 = arith.mulf %0, %1 : vector<8x256xf32>
    %cst_1 = arith.constant 1.000000e+00 : f32
    %3 = vector.broadcast %cst_1 : f32 to vector<8x256xf32>
    %4 = arith.subf %0, %3 : vector<8x256xf32>
    %cst_2 = arith.constant 0.00999999977 : f32
    %5 = vector.broadcast %cst_2 : f32 to vector<8x256xf32>
    %6 = arith.mulf %5, %4 : vector<8x256xf32>
    %cst_3 = arith.constant 1.000000e+00 : f32
    %7 = vector.broadcast %cst_3 : f32 to vector<8x256xf32>
    %8 = arith.addf %6, %7 : vector<8x256xf32>
    %9 = arith.mulf %0, %0 : vector<8x256xf32>
    %cst_4 = arith.constant 0.000000e+00 : f32
    %10 = vector.broadcast %cst_4 : f32 to vector<8x256xf32>
    %11 = arith.cmpf olt, %0, %10 : vector<8x256xf32>
    %12 = arith.select %11, %2, %9 : vector<8x256xi1>, vector<8x256xf32>
    %cst_5 = arith.constant 1.000000e+00 : f32
    %13 = vector.broadcast %cst_5 : f32 to vector<8x256xf32>
    %14 = arith.cmpf ogt, %0, %13 : vector<8x256xf32>
    %15 = arith.select %14, %8, %12 : vector<8x256xi1>, vector<8x256xf32>
    %c0_6 = arith.constant 0 : index
    %c0_7 = arith.constant 0 : index
    %16 = vector.load %arg2[%c0_6, %c0_7] : memref<8x256xf32, #tpu.memory_space<vmem>>, vector<8x256xf32>
    tpu.vector_store %arg2[%c0_6, %c0_7], %15 {strides = array<i32>} : memref<8x256xf32, #tpu.memory_space<vmem>>, vector<8x256xf32>,
    return
  }
  func.func @transform_0(%arg0: i32) -> (i32, i32) {
    %c0_i32 = arith.constant 0 : i32
    %c0_i32_0 = arith.constant 0 : i32
    return %arg0, %c0_i32 : i32, i32
  }
  func.func @transform_1(%arg0: i32) -> (i32, i32) {
    %c0_i32 = arith.constant 0 : i32
    %c0_i32_0 = arith.constant 0 : i32
    return %arg0, %c0_i32 : i32, i32
  }
}

</mosaic_0001>

<llo_original>
// kernel: tpu_custom_call.1
$region0: #{tpu_custom_call.1}
  #allocation0 [shape = 'u32[]', space=smem, size = 0x4, offset = 0x4, fixed_abs, tag = 'smem constant byte address 0x4 - core index']
  #allocation1 [shape = 'u32[144,128]{1,0:T(1,128)}', space=vmem, size = 0x12000, scoped, tag = 'internal scratch']
  %s0 = inlined_call_operand.hbm [shape: f32[8,256], index: 0, kind: input, shape index: {}]
  %s1 = inlined_call_operand.hbm [shape: f32[8,256], index: 1, kind: output, shape index: {}]
  %s2 = sld [smem:[#allocation0]]
  $region18: #{tpu_custom_call.1} parent=0
    _
  %s4 = ssub.s32 1, %s2
  %s5 = scalar_select 0, %s4, %s2
  $region1: #{tpu_custom_call.1} parent=0
    #allocation2 [shape = 'u8[8192]{0}', space=vmem, size = 0x2000, scoped, tag = 'input window, operand 0, single buffered']
    #allocation3 [shape = 's32[1]{0}', space=sflag, size = 0x4, scoped, tag = 'scoped memory for tpu_custom_call.1']
    #allocation4 [shape = 's32[1]{0}', space=sflag, size = 0x4, scoped, tag = 'scoped memory for tpu_custom_call.1']
    #allocation5 [shape = 'u8[8192]{0}', space=vmem, size = 0x2000, scoped, tag = 'output window, operand 0, single buffered']
    %6 = vsyncpa [#allocation3], 0
    %7 = vsyncpa [#allocation4], 0
    // Predicated region
    $region2: #{tpu_custom_call.1} parent=1 // pred_check
      _
    $region3: #{tpu_custom_call.1} parent=1 // pred_check_branch
      %9 = sbr.rel (0) target = $region5
    $region4: #{tpu_custom_call.1} parent=1 // pred_region
      %s11 = ssub.s32 256, 256
      %12 = vsyncadd [#allocation3], %s11
      %s14 = sshll.u32 [#allocation2], 4
      %s15 = int_to_ptr.vmem [resolvable:$true] %s14
      %17 = dma.hbm_to_vmem [thread:$0]  %s0, 256, %s15, [#allocation3]
    $region5: #{tpu_custom_call.1} parent=1 // pred_fallthru
      _
    // Predicated region
    $region6: #{tpu_custom_call.1} parent=1 // pred_check
      _
    $region7: #{tpu_custom_call.1} parent=1 // pred_check_branch
      %19 = sbr.rel (0) target = $region9
    $region8: #{tpu_custom_call.1} parent=1 // pred_region
      %20 = dma.done [#allocation3], 256
    $region9: #{tpu_custom_call.1} parent=1 // pred_fallthru
      _
    %v21 = vld [vmem:[#allocation2] sm:$0xff]
    %v22 = vld [vmem:[#allocation2 + $0x8] sm:$0xff]
    %v23 = vmul.f32 %v21, 0.01
    %v24 = vmul.f32 %v22, 0.01
    %v25 = vsub.f32 %v21, 1.0
    %v26 = vsub.f32 %v22, 1.0
    %v27 = vmul.f32 %v25, 0.01
    %v28 = vmul.f32 %v26, 0.01
    %v29 = vadd.f32 %v27, 1.0
    %v30 = vadd.f32 %v28, 1.0
    %v31 = vmul.f32 %v21, %v21
    %v32 = vmul.f32 %v22, %v22
    %vm33 = vcmp.lt.f32.partialorder %v21, 0.0
    %vm34 = vcmp.lt.f32.partialorder %v22, 0.0
    %v35 = vsel %vm33, %v23, %v31
    %v36 = vsel %vm34, %v24, %v32
    %vm37 = vcmp.gt.f32.partialorder %v21, 1.0
    %vm38 = vcmp.gt.f32.partialorder %v22, 1.0
    %v39 = vsel %vm37, %v29, %v35
    %v40 = vsel %vm38, %v30, %v36
    %41 = vst [vmem:[#allocation5] sm:$0xff] %v39
    %42 = vst [vmem:[#allocation5 + $0x8] sm:$0xff] %v40
    // Predicated region
    $region10: #{tpu_custom_call.1} parent=1 // pred_check
      _
    $region11: #{tpu_custom_call.1} parent=1 // pred_check_branch
      %44 = sbr.rel (0) target = $region13
    $region12: #{tpu_custom_call.1} parent=1 // pred_region
      %s46 = ssub.s32 256, 256
      %47 = vsyncadd [#allocation4], %s46
      %s49 = sshll.u32 [#allocation5], 4
      %s50 = int_to_ptr.vmem [resolvable:$true] %s49
      %52 = dma.vmem_to_hbm [thread:$0]  %s50, 256, %s1, [#allocation4]
    $region13: #{tpu_custom_call.1} parent=1 // pred_fallthru
      _
    // Predicated region
    $region14: #{tpu_custom_call.1} parent=1 // pred_check
      _
    $region15: #{tpu_custom_call.1} parent=1 // pred_check_branch
      %54 = sbr.rel (0) target = $region17
    $region16: #{tpu_custom_call.1} parent=1 // pred_region
      %55 = dma.done [#allocation4], 256
    $region17: #{tpu_custom_call.1} parent=1 // pred_fallthru
      _
    %56 = vsyncpa [#allocation3], 1
    %57 = vsyncpa [#allocation4], 1

</llo_original>
